<compile_context>
chip_gen: v6e
topology: v6e:2x2x1
jax: 0.10.0
libtpu: 0.0.40
codegen_flags: <defaults>
</compile_context>

<pallas_src>
import jax
import jax.numpy as jnp
from jax.experimental import pallas as pl
from jax.experimental.pallas import tpu as pltpu

_BN_EPS = 1e-3


def _fused_kernel(x_ref, w_ref, gate_ref, gamma_ref, beta_ref, o_ref):
    # x_ref     : (Cin, R)    activations, R = N*H*W (NCHW-contiguous reshape)
    # w_ref     : (Cout, Cin) 1x1 conv weight
    # gate_ref  : (1, Cin)    pre-hardsigmoid per-channel gate (x70)
    # gamma_ref : (Cout, 1)   batchnorm weight
    # beta_ref  : (Cout, 1)   batchnorm bias
    # o_ref     : (Cout, R)
    r = o_ref.shape[1]

    # Hardsigmoid gate folded into the weights (per-Cin scale, broadcast over Cout).
    gate = jnp.clip(gate_ref[...] * (1.0 / 6.0) + 0.5, 0.0, 1.0)   # (1, Cin)
    w_scaled = w_ref[...] * gate                                    # (Cout, Cin)

    # 1x1 conv == single MXU matmul: (Cout, Cin) @ (Cin, R) -> (Cout, R)
    y = jnp.dot(w_scaled, x_ref[...], preferred_element_type=jnp.float32)

    # BatchNorm2d (training mode, batch stats over N*H*W, biased variance),
    # single pass: two independent lane-reductions + one FMA pass over y.
    inv_r = 1.0 / r
    s1 = jnp.sum(y, axis=1, keepdims=True)                          # (Cout, 1)
    s2 = jnp.sum(y * y, axis=1, keepdims=True)                      # (Cout, 1)
    mean = s1 * inv_r
    var = s2 * inv_r - mean * mean
    scale = jax.lax.rsqrt(var + _BN_EPS) * gamma_ref[...]           # (Cout, 1)
    bias = beta_ref[...] - mean * scale                             # (Cout, 1)
    o_ref[...] = y * scale + bias


@jax.jit
def model_forward(x70, x66, conv_w, bn_gamma, bn_beta):
    """x70: (N, Cin, 1, 1), x66: (N, Cin, H, W), conv_w: (Cout, Cin, 1, 1)."""
    N, Cin, H, W = x66.shape
    Cout = conv_w.shape[0]
    assert N == 1, "gate broadcast layout assumes a single sample (matches module spec)"

    # All reshapes below are free (contiguous); no transposes, no packing copies.
    x_mat = x66.reshape(Cin, H * W)            # (Cin, R)
    w_mat = conv_w.reshape(Cout, Cin)          # (Cout, Cin)
    gate_pre = x70.reshape(1, Cin)             # (1, Cin)
    gamma = bn_gamma.reshape(Cout, 1)          # (Cout, 1)
    beta = bn_beta.reshape(Cout, 1)            # (Cout, 1)

    vmem_spec = pl.BlockSpec(memory_space=pltpu.MemorySpace.VMEM)
    out_mat = pl.pallas_call(
        _fused_kernel,
        out_shape=jax.ShapeDtypeStruct((Cout, H * W), jnp.float32),
        # Whole problem (~0.3 MiB) fits in VMEM; single grid point, no tiling.
        in_specs=[vmem_spec, vmem_spec, vmem_spec, vmem_spec, vmem_spec],
        out_specs=vmem_spec,
    )(x_mat, w_mat, gate_pre, gamma, beta)

    # (Cout, R) -> NCHW, free reshape (no transpose).
    return out_mat.reshape(N, Cout, H, W)
    # TODO(synk): PyTorch BatchNorm2d in training mode also updates
    # running_mean/running_var (unbiased var, momentum=0.01); the module only
    # returns x74, so those buffer updates are not produced here.


if __name__ == "__main__":
    key = jax.random.PRNGKey(0)
    k1, k2, k3 = jax.random.split(key, 3)

    N, Cin, H, W, Cout = 1, 240, 14, 14, 40

    x66 = jax.random.normal(k1, (N, Cin, H, W), dtype=jnp.float32)
    x70 = jax.random.normal(k2, (N, Cin, 1, 1), dtype=jnp.float32)

    # Deterministic parameter init (synthetic, not a checkpoint load).
    conv_w = jax.random.normal(k3, (Cout, Cin, 1, 1), dtype=jnp.float32) * 0.05
    bn_gamma = jnp.ones((Cout,), dtype=jnp.float32)   # PyTorch BatchNorm default weight
    bn_beta = jnp.zeros((Cout,), dtype=jnp.float32)   # PyTorch BatchNorm default bias

    out = model_forward(x70, x66, conv_w, bn_gamma, bn_beta)
    jax.block_until_ready(out)
    assert out.shape == (N, Cout, H, W), out.shape

    # Lightweight sanity check against a pure-JAX reference.
    gate_ref = jnp.clip(x70 / 6.0 + 0.5, 0.0, 1.0)
    x72_ref = gate_ref * x66
    y_ref = jnp.einsum("oc,nchw->nohw", conv_w.reshape(Cout, Cin), x72_ref)
    mean_ref = y_ref.mean(axis=(0, 2, 3), keepdims=True)
    var_ref = y_ref.var(axis=(0, 2, 3), keepdims=True)
    ref = (y_ref - mean_ref) * jax.lax.rsqrt(var_ref + _BN_EPS) \
        * bn_gamma.reshape(1, Cout, 1, 1) + bn_beta.reshape(1, Cout, 1, 1)
    assert jnp.allclose(out, ref, atol=2e-4, rtol=2e-4), float(jnp.max(jnp.abs(out - ref)))

    print("KERNEL_OK")
</pallas_src>

<mosaic_0001>
module attributes {stable_mosaic.version = 11 : i64} {
  func.func @_fused_kernel(%arg0: memref<240x196xf32, #tpu.memory_space<vmem>>, %arg1: memref<40x240xf32, #tpu.memory_space<vmem>>, %arg2: memref<1x240xf32, #tpu.memory_space<vmem>>, %arg3: memref<40x1xf32, #tpu.memory_space<vmem>>, %arg4: memref<40x1xf32, #tpu.memory_space<vmem>>, %arg5: memref<40x196xf32, #tpu.memory_space<vmem>>) attributes {dimension_semantics = [], scalar_prefetch = 0 : i64, scratch_operands = 0 : i64, tpu.core_type = #tpu.core_type<tc>} {
    %c0 = arith.constant 0 : index
    %c0_0 = arith.constant 0 : index
    %0 = vector.load %arg2[%c0, %c0_0] : memref<1x240xf32, #tpu.memory_space<vmem>>, vector<1x240xf32>
    %cst = arith.constant 0.166666672 : f32
    %1 = vector.broadcast %cst : f32 to vector<1x240xf32>
    %2 = arith.mulf %0, %1 : vector<1x240xf32>
    %cst_1 = arith.constant 5.000000e-01 : f32
    %3 = vector.broadcast %cst_1 : f32 to vector<1x240xf32>
    %4 = arith.addf %2, %3 : vector<1x240xf32>
    %cst_2 = arith.constant 0.000000e+00 : f32
    %cst_3 = arith.constant 1.000000e+00 : f32
    %5 = vector.broadcast %cst_2 : f32 to vector<1x240xf32>
    %6 = arith.maximumf %5, %4 : vector<1x240xf32>
    %7 = vector.broadcast %cst_3 : f32 to vector<1x240xf32>
    %8 = arith.minimumf %7, %6 : vector<1x240xf32>
    %c0_4 = arith.constant 0 : index
    %c0_5 = arith.constant 0 : index
    %9 = vector.load %arg1[%c0_4, %c0_5] : memref<40x240xf32, #tpu.memory_space<vmem>>, vector<40x240xf32>
    %10 = vector.broadcast %8 : vector<1x240xf32> to vector<40x240xf32>
    %11 = arith.mulf %9, %10 : vector<40x240xf32>
    %c0_6 = arith.constant 0 : index
    %c0_7 = arith.constant 0 : index
    %12 = vector.load %arg0[%c0_6, %c0_7] : memref<240x196xf32, #tpu.memory_space<vmem>>, vector<240x196xf32>
    %cst_8 = arith.constant dense<0.000000e+00> : vector<40x196xf32>
    %13 = tpu.matmul %11, %12, %cst_8 {dimension_numbers = #tpu.dot_dimension_numbers<[1], [0], [0], [1], [0, 0, 1, 1], [], []>} : vector<40x240xf32>, vector<240x196xf32>, vector<40x196xf32> -> vector<40x196xf32>
    %cst_9 = arith.constant dense<0.000000e+00> : vector<40xf32>
    %14 = vector.multi_reduction <add>, %13, %cst_9 [1] : vector<40x196xf32> to vector<40xf32>
    %15 = vector.shape_cast %14 : vector<40xf32> to vector<40x1xf32>
    %16 = arith.mulf %13, %13 : vector<40x196xf32>
    %cst_10 = arith.constant dense<0.000000e+00> : vector<40xf32>
    %17 = vector.multi_reduction <add>, %16, %cst_10 [1] : vector<40x196xf32> to vector<40xf32>
    %18 = vector.shape_cast %17 : vector<40xf32> to vector<40x1xf32>
    %cst_11 = arith.constant 0.00510204071 : f32
    %19 = vector.broadcast %cst_11 : f32 to vector<40x1xf32>
    %20 = arith.mulf %15, %19 : vector<40x1xf32>
    %cst_12 = arith.constant 0.00510204071 : f32
    %21 = vector.broadcast %cst_12 : f32 to vector<40x1xf32>
    %22 = arith.mulf %18, %21 : vector<40x1xf32>
    %23 = arith.mulf %20, %20 : vector<40x1xf32>
    %24 = arith.subf %22, %23 : vector<40x1xf32>
    %cst_13 = arith.constant 1.000000e-03 : f32
    %25 = vector.broadcast %cst_13 : f32 to vector<40x1xf32>
    %26 = arith.addf %24, %25 : vector<40x1xf32>
    %27 = math.rsqrt %26 : vector<40x1xf32>
    %c0_14 = arith.constant 0 : index
    %c0_15 = arith.constant 0 : index
    %28 = vector.load %arg3[%c0_14, %c0_15] : memref<40x1xf32, #tpu.memory_space<vmem>>, vector<40x1xf32>
    %29 = arith.mulf %27, %28 : vector<40x1xf32>
    %c0_16 = arith.constant 0 : index
    %c0_17 = arith.constant 0 : index
    %30 = vector.load %arg4[%c0_16, %c0_17] : memref<40x1xf32, #tpu.memory_space<vmem>>, vector<40x1xf32>
    %31 = arith.mulf %20, %29 : vector<40x1xf32>
    %32 = arith.subf %30, %31 : vector<40x1xf32>
    %33 = vector.broadcast %29 : vector<40x1xf32> to vector<40x196xf32>
    %34 = arith.mulf %13, %33 : vector<40x196xf32>
    %35 = vector.broadcast %32 : vector<40x1xf32> to vector<40x196xf32>
    %36 = arith.addf %34, %35 : vector<40x196xf32>
    %c0_18 = arith.constant 0 : index
    %c0_19 = arith.constant 0 : index
    %37 = vector.load %arg5[%c0_18, %c0_19] : memref<40x196xf32, #tpu.memory_space<vmem>>, vector<40x196xf32>
    tpu.vector_store %arg5[%c0_18, %c0_19], %36 {strides = array<i32>} : memref<40x196xf32, #tpu.memory_space<vmem>>, vector<40x196xf32>,
    return
  }
}

</mosaic_0001>

<llo_original>
// kernel: model_forward.1
$region0: #{model_forward.1}
  #allocation0 [shape = 'u32[]', space=smem, size = 0x4, offset = 0x4, fixed_abs, tag = 'smem constant byte address 0x4 - core index']
  #allocation1 [shape = 'u32[144,128]{1,0:T(1,128)}', space=vmem, size = 0x12000, scoped, tag = 'internal scratch']
  %s0 = inlined_call_operand.vmem [shape: f32[240,196], index: 0, kind: input, shape index: {}]
  %s1 = inlined_call_operand.vmem [shape: f32[40,240], index: 1, kind: input, shape index: {}]
  %s2 = inlined_call_operand.vmem [shape: f32[1,240], index: 2, kind: input, shape index: {}]
  %s3 = inlined_call_operand.vmem [shape: f32[40,1], index: 3, kind: input, shape index: {}]
  %s4 = inlined_call_operand.vmem [shape: f32[40,1], index: 4, kind: input, shape index: {}]
  %s5 = inlined_call_operand.vmem [shape: f32[40,196], index: 5, kind: output, shape index: {}]
  %s6 = sld [smem:[#allocation0]]
  $region30: #{model_forward.1} parent=0
    _
  %s8 = ssub.s32 1, %s6
  %s9 = scalar_select 0, %s8, %s6
  // Predicated region
  $region2: #{model_forward.1} parent=0 // pred_check
    _
  $region3: #{model_forward.1} parent=0 // pred_check_branch
    %11 = sbr.rel (0) target = $region5
  $region4: #{model_forward.1} parent=0 // pred_region
    _
  $region5: #{model_forward.1} parent=0 // pred_fallthru
    _
  // Predicated region
  $region6: #{model_forward.1} parent=0 // pred_check
    _
  $region7: #{model_forward.1} parent=0 // pred_check_branch
    %13 = sbr.rel (0) target = $region9
  $region8: #{model_forward.1} parent=0 // pred_region
    _
  $region9: #{model_forward.1} parent=0 // pred_fallthru
    _
  // Predicated region
  $region10: #{model_forward.1} parent=0 // pred_check
    _
  $region11: #{model_forward.1} parent=0 // pred_check_branch
    %15 = sbr.rel (0) target = $region13
  $region12: #{model_forward.1} parent=0 // pred_region
    _
  $region13: #{model_forward.1} parent=0 // pred_fallthru
    _
  // Predicated region
  $region14: #{model_forward.1} parent=0 // pred_check
    _
  $region15: #{model_forward.1} parent=0 // pred_check_branch
    %17 = sbr.rel (0) target = $region17
  $region16: #{model_forward.1} parent=0 // pred_region
    _
  $region17: #{model_forward.1} parent=0 // pred_fallthru
    _
  // Predicated region
  $region18: #{model_forward.1} parent=0 // pred_check
    _
  $region19: #{model_forward.1} parent=0 // pred_check_branch
    %19 = sbr.rel (0) target = $region21
  $region20: #{model_forward.1} parent=0 // pred_region
    _
  $region21: #{model_forward.1} parent=0 // pred_fallthru
    _
  %v20 = vld [vmem:[%s2] sm:$0x3]
  %v21 = vmul.f32 %v20, 0.16666667
  %v22 = vadd.f32 %v21, 0.5
  %v23 = vmax.f32 %v22, 0.0
  %v24 = vmin.f32 %v23, 1.0
  %v25 = vld [vmem:[%s1] sm:$0xff]
  %v26 = vld [vmem:[%s1 + $0x8] sm:$0xff]
  %v27 = vld [vmem:[%s1 + $0x10] sm:$0xff]
  %v28 = vld [vmem:[%s1 + $0x18] sm:$0xff]
  %v29 = vld [vmem:[%s1 + $0x20] sm:$0xff]
  %v30 = vld [vmem:[%s1 + $0x28] sm:$0xff]
  %v31 = vld [vmem:[%s1 + $0x30] sm:$0xff]
  %v32 = vld [vmem:[%s1 + $0x38] sm:$0xff]
  %v33 = vld [vmem:[%s1 + $0x40] sm:$0xff]
  %v34 = vld [vmem:[%s1 + $0x48] sm:$0xff]
  %v36 = vlaneseq
  %v37 = vshrl.u32 %v36, 7
  %v38 = vsub.s32 0, %v37
  %v39 = vrot.slane %v24, %v38
  %v40 = vlaneseq
  %v41 = vshrl.u32 %v40, 7
  %v42 = vsub.s32 1, %v41
  %v43 = vrot.slane %v24, %v42
  %v46 = vmul.f32 %v25, %v39
  %v47 = vmul.f32 %v26, %v43
  %v48 = vmul.f32 %v27, %v39
  %v49 = vmul.f32 %v28, %v43
  %v50 = vmul.f32 %v29, %v39
  %v51 = vmul.f32 %v30, %v43
  %v52 = vmul.f32 %v31, %v39
  %v53 = vmul.f32 %v32, %v43
  %v54 = vmul.f32 %v33, %v39
  %v55 = vmul.f32 %v34, %v43
  %v56 = vld [vmem:[%s0] sm:$0xff]
  %v57 = vld [vmem:[%s0 + $0x8] sm:$0xff]
  %v58 = vld [vmem:[%s0 + $0x10] sm:$0xff]
  %v59 = vld [vmem:[%s0 + $0x18] sm:$0xff]
  %v60 = vld [vmem:[%s0 + $0x20] sm:$0xff]
  %v61 = vld [vmem:[%s0 + $0x28] sm:$0xff]
  %v62 = vld [vmem:[%s0 + $0x30] sm:$0xff]
  %v63 = vld [vmem:[%s0 + $0x38] sm:$0xff]
  %v64 = vld [vmem:[%s0 + $0x40] sm:$0xff]
  %v65 = vld [vmem:[%s0 + $0x48] sm:$0xff]
  %v66 = vld [vmem:[%s0 + $0x50] sm:$0xff]
  %v67 = vld [vmem:[%s0 + $0x58] sm:$0xff]
  %v68 = vld [vmem:[%s0 + $0x60] sm:$0xff]
  %v69 = vld [vmem:[%s0 + $0x68] sm:$0xff]
  %v70 = vld [vmem:[%s0 + $0x70] sm:$0xff]
  %v71 = vld [vmem:[%s0 + $0x78] sm:$0xff]
  %v72 = vld [vmem:[%s0 + $0x80] sm:$0xff]
  %v73 = vld [vmem:[%s0 + $0x88] sm:$0xff]
  %v74 = vld [vmem:[%s0 + $0x90] sm:$0xff]
  %v75 = vld [vmem:[%s0 + $0x98] sm:$0xff]
  %v76 = vld [vmem:[%s0 + $0xa0] sm:$0xff]
  %v77 = vld [vmem:[%s0 + $0xa8] sm:$0xff]
  %v78 = vld [vmem:[%s0 + $0xb0] sm:$0xff]
  %v79 = vld [vmem:[%s0 + $0xb8] sm:$0xff]
  %v80 = vld [vmem:[%s0 + $0xc0] sm:$0xff]
  %v81 = vld [vmem:[%s0 + $0xc8] sm:$0xff]
  %v82 = vld [vmem:[%s0 + $0xd0] sm:$0xff]
  %v83 = vld [vmem:[%s0 + $0xd8] sm:$0xff]
  %v84 = vld [vmem:[%s0 + $0xe0] sm:$0xff]
  %v85 = vld [vmem:[%s0 + $0xe8] sm:$0xff]
  %v86 = vld [vmem:[%s0 + $0xf0] sm:$0xff]
  %v87 = vld [vmem:[%s0 + $0xf8] sm:$0xff]
  %v88 = vld [vmem:[%s0 + $0x100] sm:$0xff]
  %v89 = vld [vmem:[%s0 + $0x108] sm:$0xff]
  %v90 = vld [vmem:[%s0 + $0x110] sm:$0xff]
  %v91 = vld [vmem:[%s0 + $0x118] sm:$0xff]
  %v92 = vld [vmem:[%s0 + $0x120] sm:$0xff]
  %v93 = vld [vmem:[%s0 + $0x128] sm:$0xff]
  %v94 = vld [vmem:[%s0 + $0x130] sm:$0xff]
  %v95 = vld [vmem:[%s0 + $0x138] sm:$0xff]
  %v96 = vld [vmem:[%s0 + $0x140] sm:$0xff]
  %v97 = vld [vmem:[%s0 + $0x148] sm:$0xff]
  %v98 = vld [vmem:[%s0 + $0x150] sm:$0xff]
  %v99 = vld [vmem:[%s0 + $0x158] sm:$0xff]
  %v100 = vld [vmem:[%s0 + $0x160] sm:$0xff]
  %v101 = vld [vmem:[%s0 + $0x168] sm:$0xff]
  %v102 = vld [vmem:[%s0 + $0x170] sm:$0xff]
  %v103 = vld [vmem:[%s0 + $0x178] sm:$0xff]
  %v104 = vld [vmem:[%s0 + $0x180] sm:$0xff]
  %v105 = vld [vmem:[%s0 + $0x188] sm:$0xff]
  %v106 = vld [vmem:[%s0 + $0x190] sm:$0xff]
  %v107 = vld [vmem:[%s0 + $0x198] sm:$0xff]
  %v108 = vld [vmem:[%s0 + $0x1a0] sm:$0xff]
  %v109 = vld [vmem:[%s0 + $0x1a8] sm:$0xff]
  %v110 = vld [vmem:[%s0 + $0x1b0] sm:$0xff]
  %v111 = vld [vmem:[%s0 + $0x1b8] sm:$0xff]
  %v112 = vld [vmem:[%s0 + $0x1c0] sm:$0xff]
  %v113 = vld [vmem:[%s0 + $0x1c8] sm:$0xff]
  %v114 = vld [vmem:[%s0 + $0x1d0] sm:$0xff]
  %v115 = vld [vmem:[%s0 + $0x1d8] sm:$0xff]
  %vm116 = vcmask 916480
  %v118 = vsel %vm116, %v47, 0
  %v121 = vsel %vm116, %v49, 0
  %v124 = vsel %vm116, %v51, 0
  %v127 = vsel %vm116, %v53, 0
  %v130 = vsel %vm116, %v55, 0
  %132 = vmatprep.subr.mxu0 %v87
  %133 = vmatpush1.msra.mxu0 %v86
  %134 = vmatprep.subr.mxu0 %v85
  %135 = vmatpush1.msra.mxu0 %v84
  %136 = vmatprep.subr.mxu0 %v83
  %137 = vmatpush1.msra.mxu0 %v82
  %138 = vmatprep.subr.mxu0 %v81
  %139 = vmatpush1.msra.mxu0 %v80
  %140 = vmatprep.subr.mxu0 %v79
  %141 = vmatpush1.msra.mxu0 %v78
  %142 = vmatprep.subr.mxu0 %v77
  %143 = vmatpush1.msra.mxu0 %v76
  %144 = vmatprep.subr.mxu0 %v75
  %145 = vmatpush1.msra.mxu0 %v74
  %146 = vmatprep.subr.mxu0 %v73
  %147 = vmatpush1.msra.mxu0 %v72
  %148 = vmatprep.subr.mxu0 %v71
  %149 = vmatpush1.msra.mxu0 %v70
  %150 = vmatprep.subr.mxu0 %v69
  %151 = vmatpush1.msra.mxu0 %v68
  %152 = vmatprep.subr.mxu0 %v67
  %153 = vmatpush1.msra.mxu0 %v66
  %154 = vmatprep.subr.mxu0 %v65
  %155 = vmatpush1.msra.mxu0 %v64
  %156 = vmatprep.subr.mxu0 %v63
  %157 = vmatpush1.msra.mxu0 %v62
  %158 = vmatprep.subr.mxu0 %v61
  %159 = vmatpush1.msra.mxu0 %v60
  %160 = vmatprep.subr.mxu0 %v59
  %161 = vmatpush1.msra.mxu0 %v58
  %162 = vmatprep.subr.mxu0 %v57
  %163 = vmatpush1.msra.mxu0 %v56
  %164 = vmatprep.subr.mxu0 0.0
  %165 = vmatpush2.msra.mxu0 0.0
  %166 = vmatprep.subr.mxu0 0.0
  %167 = vmatpush2.msra.mxu0 0.0
  %168 = vmatprep.subr.mxu0 %v115
  %169 = vmatpush2.msra.mxu0 %v114
  %170 = vmatprep.subr.mxu0 %v113
  %171 = vmatpush2.msra.mxu0 %v112
  %172 = vmatprep.subr.mxu0 %v111
  %173 = vmatpush2.msra.mxu0 %v110
  %174 = vmatprep.subr.mxu0 %v109
  %175 = vmatpush2.msra.mxu0 %v108
  %176 = vmatprep.subr.mxu0 %v107
  %177 = vmatpush2.msra.mxu0 %v106
  %178 = vmatprep.subr.mxu0 %v105
  %179 = vmatpush2.msra.mxu0 %v104
  %180 = vmatprep.subr.mxu0 %v103
  %181 = vmatpush2.msra.mxu0 %v102
  %182 = vmatprep.subr.mxu0 %v101
  %183 = vmatpush2.msra.mxu0 %v100
  %184 = vmatprep.subr.mxu0 %v99
  %185 = vmatpush2.msra.mxu0 %v98
  %186 = vmatprep.subr.mxu0 %v97
  %187 = vmatpush2.msra.mxu0 %v96
  %188 = vmatprep.subr.mxu0 %v95
  %189 = vmatpush2.msra.mxu0 %v94
  %190 = vmatprep.subr.mxu0 %v93
  %191 = vmatpush2.msra.mxu0 %v92
  %192 = vmatprep.subr.mxu0 %v91
  %193 = vmatpush2.msra.mxu0 %v90
  %194 = vmatprep.subr.mxu0 %v89
  %195 = vmatpush2.msra.mxu0 %v88
  %196 = vmatprep.mubr.f32.mxu0 %v118
  %197 = vmatmul.mubr.f32.gmra.mxu0 %v46
  %v198 = vpop.f32.mrf.mxu0
  %v199 = vadd.f32 0.0, %v198
  %v200 = vpop.f32.mrf.mxu0
  %v201 = vadd.f32 0.0, %v200
  %202 = vmatprep.mubr.f32.mxu0 %v121
  %203 = vmatmul.mubr.f32.gmra.mxu0 %v48
  %v204 = vpop.f32.mrf.mxu0
  %v205 = vadd.f32 0.0, %v204
  %v206 = vpop.f32.mrf.mxu0
  %v207 = vadd.f32 0.0, %v206
  %208 = vmatprep.mubr.f32.mxu0 %v124
  %209 = vmatmul.mubr.f32.gmra.mxu0 %v50
  %v210 = vpop.f32.mrf.mxu0
  %v211 = vadd.f32 0.0, %v210
  %v212 = vpop.f32.mrf.mxu0
  %v213 = vadd.f32 0.0, %v212
  %214 = vmatprep.mubr.f32.mxu0 %v127
  %215 = vmatmul.mubr.f32.gmra.mxu0 %v52
  %v216 = vpop.f32.mrf.mxu0
  %v217 = vadd.f32 0.0, %v216
  %v218 = vpop.f32.mrf.mxu0
  %v219 = vadd.f32 0.0, %v218
  %220 = vmatprep.mubr.f32.mxu0 %v130
  %221 = vmatmul.mubr.f32.gmra.mxu0 %v54
  %v222 = vpop.f32.mrf.mxu0
  %v223 = vadd.f32 0.0, %v222
  %v224 = vpop.f32.mrf.mxu0
  %v225 = vadd.f32 0.0, %v224
  %226 = vdwg.mxu0
  %vm227 = vcmask 556032
  %v228 = vsel %vm227, %v201, 0.0
  %v229 = vadd.f32 %v199, %v228
  %230 = vadd.xlane.f32.xlu0 %v229
  %v231 = vpop.xlane.xlu0 %230
  %v232 = vsel %vm227, %v207, 0.0
  %v233 = vadd.f32 %v205, %v232
  %234 = vadd.xlane.f32.xlu0 %v233
  %v235 = vpop.xlane.xlu0 %234
  %v236 = vsel %vm227, %v213, 0.0
  %v237 = vadd.f32 %v211, %v236
  %238 = vadd.xlane.f32.xlu0 %v237
  %v239 = vpop.xlane.xlu0 %238
  %v240 = vsel %vm227, %v219, 0.0
  %v241 = vadd.f32 %v217, %v240
  %242 = vadd.xlane.f32.xlu0 %v241
  %v243 = vpop.xlane.xlu0 %242
  %v244 = vsel %vm227, %v225, 0.0
  %v245 = vadd.f32 %v223, %v244
  %246 = vadd.xlane.f32.xlu0 %v245
  %v247 = vpop.xlane.xlu0 %246
  %v248 = vmul.f32 %v199, %v199
  %v249 = vmul.f32 %v201, %v201
  %v250 = vmul.f32 %v205, %v205
  %v251 = vmul.f32 %v207, %v207
  %v252 = vmul.f32 %v211, %v211
  %v253 = vmul.f32 %v213, %v213
  %v254 = vmul.f32 %v217, %v217
  %v255 = vmul.f32 %v219, %v219
  %v256 = vmul.f32 %v223, %v223
  %v257 = vmul.f32 %v225, %v225
  %v258 = vsel %vm227, %v249, 0.0
  %v259 = vadd.f32 %v248, %v258
  %260 = vadd.xlane.f32.xlu0 %v259
  %v261 = vpop.xlane.xlu0 %260
  %v262 = vsel %vm227, %v251, 0.0
  %v263 = vadd.f32 %v250, %v262
  %264 = vadd.xlane.f32.xlu0 %v263
  %v265 = vpop.xlane.xlu0 %264
  %v266 = vsel %vm227, %v253, 0.0
  %v267 = vadd.f32 %v252, %v266
  %268 = vadd.xlane.f32.xlu0 %v267
  %v269 = vpop.xlane.xlu0 %268
  %v270 = vsel %vm227, %v255, 0.0
  %v271 = vadd.f32 %v254, %v270
  %272 = vadd.xlane.f32.xlu0 %v271
  %v273 = vpop.xlane.xlu0 %272
  %v274 = vsel %vm227, %v257, 0.0
  %v275 = vadd.f32 %v256, %v274
  %276 = vadd.xlane.f32.xlu0 %v275
  %v277 = vpop.xlane.xlu0 %276
  %v278 = vmul.f32 %v231, 0.0051020407
  %v279 = vmul.f32 %v235, 0.0051020407
  %v280 = vmul.f32 %v239, 0.0051020407
  %v281 = vmul.f32 %v243, 0.0051020407
  %v282 = vmul.f32 %v247, 0.0051020407
  %v283 = vmul.f32 %v261, 0.0051020407
  %v284 = vmul.f32 %v265, 0.0051020407
  %v285 = vmul.f32 %v269, 0.0051020407
  %v286 = vmul.f32 %v273, 0.0051020407
  %v287 = vmul.f32 %v277, 0.0051020407
  %v288 = vmul.f32 %v278, %v278
  %v289 = vmul.f32 %v279, %v279
  %v290 = vmul.f32 %v280, %v280
  %v291 = vmul.f32 %v281, %v281
  %v292 = vmul.f32 %v282, %v282
  %v293 = vsub.f32 %v283, %v288
  %v294 = vsub.f32 %v284, %v289
  %v295 = vsub.f32 %v285, %v290
  %v296 = vsub.f32 %v286, %v291
  %v297 = vsub.f32 %v287, %v292
  %v298 = vadd.f32 %v293, 0.001
  %v299 = vadd.f32 %v294, 0.001
  %v300 = vadd.f32 %v295, 0.001
  %v301 = vadd.f32 %v296, 0.001
  %v302 = vadd.f32 %v297, 0.001
  %v303 = vrsqrt.pop %v298
  %v304 = vrsqrt.pop %v299
  %v305 = vrsqrt.pop %v300
  %v306 = vrsqrt.pop %v301
  %v307 = vrsqrt.pop %v302
  %v308 = vld [vmem:[%s3] sm:$0xff]
  %v309 = vld [vmem:[%s3 + $0x8] sm:$0xff]
  %v310 = vld [vmem:[%s3 + $0x10] sm:$0xff]
  %v311 = vld [vmem:[%s3 + $0x18] sm:$0xff]
  %v312 = vld [vmem:[%s3 + $0x20] sm:$0xff]
  %v313 = vmul.f32 %v303, %v308
  %v314 = vmul.f32 %v304, %v309
  %v315 = vmul.f32 %v305, %v310
  %v316 = vmul.f32 %v306, %v311
  %v317 = vmul.f32 %v307, %v312
  %v318 = vld [vmem:[%s4] sm:$0xff]
  %v319 = vld [vmem:[%s4 + $0x8] sm:$0xff]
  %v320 = vld [vmem:[%s4 + $0x10] sm:$0xff]
  %v321 = vld [vmem:[%s4 + $0x18] sm:$0xff]
  %v322 = vld [vmem:[%s4 + $0x20] sm:$0xff]
  %v323 = vmul.f32 %v278, %v313
  %v324 = vmul.f32 %v279, %v314
  %v325 = vmul.f32 %v280, %v315
  %v326 = vmul.f32 %v281, %v316
  %v327 = vmul.f32 %v282, %v317
  %v328 = vsub.f32 %v318, %v323
  %v329 = vsub.f32 %v319, %v324
  %v330 = vsub.f32 %v320, %v325
  %v331 = vsub.f32 %v321, %v326
  %v332 = vsub.f32 %v322, %v327
  %334 = vset.pattern.permute.xlu0 0
  %335 = vperm.xlu0 %334, %v313
  %v336 = vpop.permute.xlu0 %335
  %339 = vset.pattern.permute.xlu0 0
  %340 = vperm.xlu0 %339, %v314
  %v341 = vpop.permute.xlu0 %340
  %344 = vset.pattern.permute.xlu0 0
  %345 = vperm.xlu0 %344, %v315
  %v346 = vpop.permute.xlu0 %345
  %349 = vset.pattern.permute.xlu0 0
  %350 = vperm.xlu0 %349, %v316
  %v351 = vpop.permute.xlu0 %350
  %354 = vset.pattern.permute.xlu0 0
  %355 = vperm.xlu0 %354, %v317
  %v356 = vpop.permute.xlu0 %355
  %v358 = vmul.f32 %v199, %v336
  %v359 = vmul.f32 %v201, %v336
  %v360 = vmul.f32 %v205, %v341
  %v361 = vmul.f32 %v207, %v341
  %v362 = vmul.f32 %v211, %v346
  %v363 = vmul.f32 %v213, %v346
  %v364 = vmul.f32 %v217, %v351
  %v365 = vmul.f32 %v219, %v351
  %v366 = vmul.f32 %v223, %v356
  %v367 = vmul.f32 %v225, %v356
  %369 = vset.pattern.permute.xlu0 0
  %370 = vperm.xlu0 %369, %v328
  %v371 = vpop.permute.xlu0 %370
  %374 = vset.pattern.permute.xlu0 0
  %375 = vperm.xlu0 %374, %v329
  %v376 = vpop.permute.xlu0 %375
  %379 = vset.pattern.permute.xlu0 0
  %380 = vperm.xlu0 %379, %v330
  %v381 = vpop.permute.xlu0 %380
  %384 = vset.pattern.permute.xlu0 0
  %385 = vperm.xlu0 %384, %v331
  %v386 = vpop.permute.xlu0 %385
  %389 = vset.pattern.permute.xlu0 0
  %390 = vperm.xlu0 %389, %v332
  %v391 = vpop.permute.xlu0 %390
  %v393 = vadd.f32 %v358, %v371
  %v394 = vadd.f32 %v359, %v371
  %v395 = vadd.f32 %v360, %v376
  %v396 = vadd.f32 %v361, %v376
  %v397 = vadd.f32 %v362, %v381
  %v398 = vadd.f32 %v363, %v381
  %v399 = vadd.f32 %v364, %v386
  %v400 = vadd.f32 %v365, %v386
  %v401 = vadd.f32 %v366, %v391
  %v402 = vadd.f32 %v367, %v391
  %403 = vst [vmem:[%s5] sm:$0xff] %v393
  %404 = vst.msk [vmem:[%s5 + $0x8] sm:$0xff] %vm227, %v394
  %405 = vst [vmem:[%s5 + $0x10] sm:$0xff] %v395
  %406 = vst.msk [vmem:[%s5 + $0x18] sm:$0xff] %vm227, %v396
  %407 = vst [vmem:[%s5 + $0x20] sm:$0xff] %v397
  %408 = vst.msk [vmem:[%s5 + $0x28] sm:$0xff] %vm227, %v398
  %409 = vst [vmem:[%s5 + $0x30] sm:$0xff] %v399
  %410 = vst.msk [vmem:[%s5 + $0x38] sm:$0xff] %vm227, %v400
  %411 = vst [vmem:[%s5 + $0x40] sm:$0xff] %v401
  %412 = vst.msk [vmem:[%s5 + $0x48] sm:$0xff] %vm227, %v402
  // Predicated region
  $region22: #{model_forward.1} parent=0 // pred_check
    _
  $region23: #{model_forward.1} parent=0 // pred_check_branch
    %414 = sbr.rel (0) target = $region25
  $region24: #{model_forward.1} parent=0 // pred_region
    _
  $region25: #{model_forward.1} parent=0 // pred_fallthru
    _
  // Predicated region
  $region26: #{model_forward.1} parent=0 // pred_check
    _
  $region27: #{model_forward.1} parent=0 // pred_check_branch
    %416 = sbr.rel (0) target = $region29
  $region28: #{model_forward.1} parent=0 // pred_region
    _
  $region29: #{model_forward.1} parent=0 // pred_fallthru
    _

</llo_original>
